<compile_context>
chip_gen: v7x
topology: tpu7x:2x2x1
jax: 0.10.0
libtpu: 0.0.40
codegen_flags: <defaults>
</compile_context>

<pallas_src>
import jax
import jax.numpy as jnp
from jax.experimental import pallas as pl
from jax.experimental.pallas import tpu as pltpu

F32 = jnp.float32
NEG_INF = -1000000000.0  # matches masked_fill value in the PyTorch reference


# ----------------------------- Pallas kernel -----------------------------
def _make_sdpa_kernel(inv_temperature: float, has_mask: bool):
    """Build the fused SDPA kernel. Mask presence is a static (trace-time) branch."""

    def kernel(*refs):
        if has_mask:
            q_ref, k_ref, v_ref, mask_ref, out_ref, attn_ref = refs
        else:
            q_ref, k_ref, v_ref, out_ref, attn_ref = refs
            mask_ref = None

        # q/k/v blocks: (G, T, D) with G = B*H folded (all batches & heads at once).
        q = q_ref[...] * inv_temperature                      # scale once, no divide
        # Contract over the last dims of q and k -> no explicit k transpose.
        scores = jnp.einsum("bqd,bkd->bqk", q, k_ref[...],
                            preferred_element_type=jnp.float32)   # (G, T, T)

        if mask_ref is not None:
            m = mask_ref[...]                                 # (T, T), broadcast over G
            scores = jnp.where(m[None, :, :] == 1.0, NEG_INF, scores)

        # numerically-stable softmax over the last dim
        smax = jnp.max(scores, axis=-1, keepdims=True)
        p = jnp.exp(scores - smax)
        denom = jnp.sum(p, axis=-1, keepdims=True)
        attn = p * pl.reciprocal(denom, approx=True)          # EUP, off the VALU path

        # TODO(synk): attn_dropout treated as identity (eval mode; SAITS passes 0.0).
        attn_ref[...] = attn
        out_ref[...] = jnp.einsum("bqk,bkd->bqd", attn, v_ref[...],
                                  preferred_element_type=jnp.float32)

    return kernel


# ----------------------------- wrapper -----------------------------
def scaled_dot_product_attention(q, k, v, attn_mask=None, temperature=None):
    """Pallas TPU equivalent of SAITS ScaledDotProductAttention.forward (eval mode).

    q, k : (B, H, T, Dk)    v : (B, H, T, Dv)
    attn_mask : None or anything reshapeable to (T, T) (e.g. the SAITS diagonal mask).
    Returns (output (B, H, T, Dv), attn (B, H, T, T)).
    """
    B, H, T, Dk = q.shape
    Dv = v.shape[-1]
    if temperature is None:
        temperature = float(Dk) ** 0.5
    G = B * H

    # Fold batch x heads (leading-dim collapse, free) -> one kernel invocation,
    # no per-batch grid steps, no per-head loop inside the kernel.
    qf = q.reshape(G, T, Dk).astype(F32)
    kf = k.reshape(G, T, Dk).astype(F32)
    vf = v.reshape(G, T, Dv).astype(F32)

    has_mask = attn_mask is not None
    kernel = _make_sdpa_kernel(1.0 / float(temperature), has_mask)

    in_specs = [
        pl.BlockSpec((G, T, Dk), lambda i: (0, 0, 0)),
        pl.BlockSpec((G, T, Dk), lambda i: (0, 0, 0)),
        pl.BlockSpec((G, T, Dv), lambda i: (0, 0, 0)),
    ]
    operands = [qf, kf, vf]
    if has_mask:
        maskf = jnp.asarray(attn_mask, dtype=F32).reshape(T, T)
        in_specs.append(pl.BlockSpec((T, T), lambda i: (0, 0)))
        operands.append(maskf)

    out, attn = pl.pallas_call(
        kernel,
        grid=(1,),  # whole problem fits in VMEM; single invocation, no grid loop
        out_shape=(
            jax.ShapeDtypeStruct((G, T, Dv), F32),
            jax.ShapeDtypeStruct((G, T, T), F32),
        ),
        in_specs=in_specs,
        out_specs=(
            pl.BlockSpec((G, T, Dv), lambda i: (0, 0, 0)),
            pl.BlockSpec((G, T, T), lambda i: (0, 0, 0)),
        ),
        compiler_params=pltpu.CompilerParams(dimension_semantics=("arbitrary",)),
    )(*operands)

    return out.reshape(B, H, T, Dv), attn.reshape(B, H, T, T)


# ----------------------------- pure-JAX reference -----------------------------
def sdpa_reference(q, k, v, attn_mask, temperature):
    attn = jnp.matmul(q / temperature, jnp.swapaxes(k, 2, 3))
    if attn_mask is not None:
        attn = jnp.where(attn_mask == 1.0, NEG_INF, attn)
    attn = jax.nn.softmax(attn, axis=-1)
    out = jnp.matmul(attn, v)
    return out, attn


# ----------------------------- main -----------------------------
if __name__ == "__main__":
    key = jax.random.PRNGKey(0)
    kq, kk, kv = jax.random.split(key, 3)

    B, H, T, DK, DV = 2, 2, 8, 16, 16
    temperature = float(DK) ** 0.5

    q = jax.random.normal(kq, (B, H, T, DK), dtype=F32)
    k = jax.random.normal(kk, (B, H, T, DK), dtype=F32)
    v = jax.random.normal(kv, (B, H, T, DV), dtype=F32)
    diag_mask = jnp.eye(T, dtype=F32)          # SAITS diagonal attention mask

    # masked path
    out, attn = scaled_dot_product_attention(q, k, v, attn_mask=diag_mask,
                                             temperature=temperature)
    jax.block_until_ready((out, attn))

    ref_out, ref_attn = sdpa_reference(q, k, v, diag_mask[None, None], temperature)

    assert out.shape == (B, H, T, DV)
    assert attn.shape == (B, H, T, T)
    assert bool(jnp.all(jnp.isfinite(out))) and bool(jnp.all(jnp.isfinite(attn)))
    # tolerance accommodates the approximate EUP reciprocal in the softmax denominator
    assert bool(jnp.allclose(attn, ref_attn, atol=1e-2, rtol=1e-2))
    assert bool(jnp.allclose(out, ref_out, atol=1e-2, rtol=1e-2))
    assert bool(jnp.allclose(jnp.sum(attn, axis=-1), 1.0, atol=1e-2))

    # unmasked path (attn_mask=None branch of the reference forward)
    out2, attn2 = scaled_dot_product_attention(q, k, v, attn_mask=None,
                                               temperature=temperature)
    jax.block_until_ready((out2, attn2))
    ref_out2, ref_attn2 = sdpa_reference(q, k, v, None, temperature)
    assert bool(jnp.allclose(out2, ref_out2, atol=1e-2, rtol=1e-2))
    assert bool(jnp.allclose(attn2, ref_attn2, atol=1e-2, rtol=1e-2))

    print("KERNEL_OK")
</pallas_src>

<mosaic_0001>
module attributes {stable_mosaic.version = 11 : i64} {
  func.func @kernel(%arg0: i32, %arg1: memref<4x8x16xf32, #tpu.memory_space<vmem>>, %arg2: memref<4x8x16xf32, #tpu.memory_space<vmem>>, %arg3: memref<4x8x16xf32, #tpu.memory_space<vmem>>, %arg4: memref<8x8xf32, #tpu.memory_space<vmem>>, %arg5: memref<4x8x16xf32, #tpu.memory_space<vmem>>, %arg6: memref<4x8x8xf32, #tpu.memory_space<vmem>>) attributes {dimension_semantics = [#tpu.dimension_semantics<arbitrary>], iteration_bounds = array<i64: 1>, scalar_prefetch = 0 : i64, scratch_operands = 0 : i64, tpu.core_type = #tpu.core_type<tc>, window_params = [{pipeline_mode = #tpu.pipeline_mode<synchronous>, transform_indices = @transform_0, window_bounds = array<i64: 4, 8, 16>}, {pipeline_mode = #tpu.pipeline_mode<synchronous>, transform_indices = @transform_1, window_bounds = array<i64: 4, 8, 16>}, {pipeline_mode = #tpu.pipeline_mode<synchronous>, transform_indices = @transform_2, window_bounds = array<i64: 4, 8, 16>}, {pipeline_mode = #tpu.pipeline_mode<synchronous>, transform_indices = @transform_3, window_bounds = array<i64: 8, 8>}, {pipeline_mode = #tpu.pipeline_mode<synchronous>, transform_indices = @transform_4, window_bounds = array<i64: 4, 8, 16>}, {pipeline_mode = #tpu.pipeline_mode<synchronous>, transform_indices = @transform_5, window_bounds = array<i64: 4, 8, 8>}]} {
    %c0 = arith.constant 0 : index
    %c0_0 = arith.constant 0 : index
    %c0_1 = arith.constant 0 : index
    %0 = vector.load %arg1[%c0, %c0_0, %c0_1] : memref<4x8x16xf32, #tpu.memory_space<vmem>>, vector<4x8x16xf32>
    %cst = arith.constant 2.500000e-01 : f32
    %1 = vector.broadcast %cst : f32 to vector<4x8x16xf32>
    %2 = arith.mulf %0, %1 : vector<4x8x16xf32>
    %c0_2 = arith.constant 0 : index
    %c0_3 = arith.constant 0 : index
    %c0_4 = arith.constant 0 : index
    %3 = vector.load %arg2[%c0_2, %c0_3, %c0_4] : memref<4x8x16xf32, #tpu.memory_space<vmem>>, vector<4x8x16xf32>
    "tpu.trace_start"() <{level = 10 : i32, message = "bqd,bkd->bqk"}> : () -> ()
    %cst_5 = arith.constant dense<0.000000e+00> : vector<4x8x8xf32>
    %4 = tpu.matmul %2, %3, %cst_5 {dimension_numbers = #tpu.dot_dimension_numbers<[2], [2], [1], [1], [0, 0, 0, 1, 1, 1], [0], [0]>} : vector<4x8x16xf32>, vector<4x8x16xf32>, vector<4x8x8xf32> -> vector<4x8x8xf32>
    "tpu.trace_stop"() : () -> ()
    %c0_6 = arith.constant 0 : index
    %c0_7 = arith.constant 0 : index
    %5 = vector.load %arg4[%c0_6, %c0_7] : memref<8x8xf32, #tpu.memory_space<vmem>>, vector<8x8xf32>
    %6 = vector.shape_cast %5 : vector<8x8xf32> to vector<1x8x8xf32>
    %cst_8 = arith.constant 1.000000e+00 : f32
    %7 = vector.broadcast %cst_8 : f32 to vector<1x8x8xf32>
    %8 = arith.cmpf oeq, %6, %7 : vector<1x8x8xf32>
    %cst_9 = arith.constant -1.000000e+09 : f32
    %9 = vector.shape_cast %8 : vector<1x8x8xi1> to vector<1x8x8xi1>
    %10 = vector.broadcast %9 : vector<1x8x8xi1> to vector<4x8x8xi1>
    %11 = vector.broadcast %cst_9 : f32 to vector<4x8x8xf32>
    %12 = arith.select %10, %11, %4 : vector<4x8x8xi1>, vector<4x8x8xf32>
    %cst_10 = arith.constant dense<0xFF800000> : vector<4x8xf32>
    %13 = vector.multi_reduction <maximumf>, %12, %cst_10 [2] : vector<4x8x8xf32> to vector<4x8xf32>
    %14 = vector.shape_cast %13 : vector<4x8xf32> to vector<4x8x1xf32>
    %15 = vector.broadcast %14 : vector<4x8x1xf32> to vector<4x8x8xf32>
    %16 = arith.subf %12, %15 : vector<4x8x8xf32>
    %17 = math.exp %16 : vector<4x8x8xf32>
    %cst_11 = arith.constant dense<0.000000e+00> : vector<4x8xf32>
    %18 = vector.multi_reduction <add>, %17, %cst_11 [2] : vector<4x8x8xf32> to vector<4x8xf32>
    %19 = vector.shape_cast %18 : vector<4x8xf32> to vector<4x8x1xf32>
    %20 = tpu.reciprocal %19 {approx = true} : vector<4x8x1xf32> -> vector<4x8x1xf32>
    %21 = vector.broadcast %20 : vector<4x8x1xf32> to vector<4x8x8xf32>
    %22 = arith.mulf %17, %21 : vector<4x8x8xf32>
    %c0_12 = arith.constant 0 : index
    %c0_13 = arith.constant 0 : index
    %c0_14 = arith.constant 0 : index
    %23 = vector.load %arg6[%c0_12, %c0_13, %c0_14] : memref<4x8x8xf32, #tpu.memory_space<vmem>>, vector<4x8x8xf32>
    tpu.vector_store %arg6[%c0_12, %c0_13, %c0_14], %22 {strides = array<i32>} : memref<4x8x8xf32, #tpu.memory_space<vmem>>, vector<4x8x8xf32>,
    %c0_15 = arith.constant 0 : index
    %c0_16 = arith.constant 0 : index
    %c0_17 = arith.constant 0 : index
    %24 = vector.load %arg3[%c0_15, %c0_16, %c0_17] : memref<4x8x16xf32, #tpu.memory_space<vmem>>, vector<4x8x16xf32>
    "tpu.trace_start"() <{level = 10 : i32, message = "bqk,bkd->bqd"}> : () -> ()
    %cst_18 = arith.constant dense<0.000000e+00> : vector<4x8x16xf32>
    %25 = tpu.matmul %22, %24, %cst_18 {dimension_numbers = #tpu.dot_dimension_numbers<[2], [1], [1], [2], [0, 0, 0, 1, 1, 2], [0], [0]>} : vector<4x8x8xf32>, vector<4x8x16xf32>, vector<4x8x16xf32> -> vector<4x8x16xf32>
    "tpu.trace_stop"() : () -> ()
    %c0_19 = arith.constant 0 : index
    %c0_20 = arith.constant 0 : index
    %c0_21 = arith.constant 0 : index
    %26 = vector.load %arg5[%c0_19, %c0_20, %c0_21] : memref<4x8x16xf32, #tpu.memory_space<vmem>>, vector<4x8x16xf32>
    tpu.vector_store %arg5[%c0_19, %c0_20, %c0_21], %25 {strides = array<i32>} : memref<4x8x16xf32, #tpu.memory_space<vmem>>, vector<4x8x16xf32>,
    return
  }
  func.func @transform_0(%arg0: i32) -> (i32, i32, i32) {
    %c0_i32 = arith.constant 0 : i32
    %c0_i32_0 = arith.constant 0 : i32
    %c0_i32_1 = arith.constant 0 : i32
    %c0_i32_2 = arith.constant 0 : i32
    return %c0_i32, %c0_i32_0, %c0_i32_1 : i32, i32, i32
  }
  func.func @transform_1(%arg0: i32) -> (i32, i32, i32) {
    %c0_i32 = arith.constant 0 : i32
    %c0_i32_0 = arith.constant 0 : i32
    %c0_i32_1 = arith.constant 0 : i32
    %c0_i32_2 = arith.constant 0 : i32
    return %c0_i32, %c0_i32_0, %c0_i32_1 : i32, i32, i32
  }
  func.func @transform_2(%arg0: i32) -> (i32, i32, i32) {
    %c0_i32 = arith.constant 0 : i32
    %c0_i32_0 = arith.constant 0 : i32
    %c0_i32_1 = arith.constant 0 : i32
    %c0_i32_2 = arith.constant 0 : i32
    return %c0_i32, %c0_i32_0, %c0_i32_1 : i32, i32, i32
  }
  func.func @transform_3(%arg0: i32) -> (i32, i32) {
    %c0_i32 = arith.constant 0 : i32
    %c0_i32_0 = arith.constant 0 : i32
    %c0_i32_1 = arith.constant 0 : i32
    return %c0_i32, %c0_i32_0 : i32, i32
  }
  func.func @transform_4(%arg0: i32) -> (i32, i32, i32) {
    %c0_i32 = arith.constant 0 : i32
    %c0_i32_0 = arith.constant 0 : i32
    %c0_i32_1 = arith.constant 0 : i32
    %c0_i32_2 = arith.constant 0 : i32
    return %c0_i32, %c0_i32_0, %c0_i32_1 : i32, i32, i32
  }
  func.func @transform_5(%arg0: i32) -> (i32, i32, i32) {
    %c0_i32 = arith.constant 0 : i32
    %c0_i32_0 = arith.constant 0 : i32
    %c0_i32_1 = arith.constant 0 : i32
    %c0_i32_2 = arith.constant 0 : i32
    return %c0_i32, %c0_i32_0, %c0_i32_1 : i32, i32, i32
  }
}

</mosaic_0001>

<llo_original>
// kernel: tpu_custom_call.1
$region0: #{tpu_custom_call.1}
  #allocation0 [shape = 'u32[]', space=smem, size = 0x4, offset = 0x4, fixed_abs, tag = 'smem constant byte address 0x4 - core index']
  #allocation1 [shape = 'u32[144,128]{1,0:T(1,128)}', space=vmem, size = 0x12000, scoped, tag = 'internal scratch']
  %s0 = inlined_call_operand.hbm [shape: f32[4,8,16], index: 0, kind: input, shape index: {}]
  %s1 = inlined_call_operand.hbm [shape: f32[4,8,16], index: 1, kind: input, shape index: {}]
  %s2 = inlined_call_operand.hbm [shape: f32[4,8,16], index: 2, kind: input, shape index: {}]
  %s3 = inlined_call_operand.vmem [shape: f32[8,8], index: 3, kind: input, shape index: {}]
  %s4 = inlined_call_operand.hbm [shape: f32[4,8,16], index: 4, kind: output, shape index: {0}]
  %s5 = inlined_call_operand.hbm [shape: f32[4,8,8], index: 5, kind: output, shape index: {1}]
  %6 = xla_tuple %s4, %s5
  %s7 = sld [smem:[#allocation0]]
  $region46: #{tpu_custom_call.1} parent=0
    _
  %s9 = ssub.s32 1, %s7
  %s10 = scalar_select 0, %s9, %s7
  $region1: #{tpu_custom_call.1} parent=0
    #allocation2 [shape = 'u8[16384]{0}', space=vmem, size = 0x4000, scoped, tag = 'input window, operand 0, single buffered']
    #allocation3 [shape = 's32[1]{0}', space=sflag, size = 0x4, scoped, tag = 'scoped memory for tpu_custom_call.1']
    #allocation4 [shape = 's32[1]{0}', space=sflag, size = 0x4, scoped, tag = 'scoped memory for tpu_custom_call.1']
    #allocation5 [shape = 'u8[16384]{0}', space=vmem, size = 0x4000, scoped, tag = 'input window, operand 1, single buffered']
    #allocation6 [shape = 's32[1]{0}', space=sflag, size = 0x4, scoped, tag = 'scoped memory for tpu_custom_call.1']
    #allocation7 [shape = 'u8[16384]{0}', space=vmem, size = 0x4000, scoped, tag = 'input window, operand 2, single buffered']
    #allocation8 [shape = 'u8[16384]{0}', space=vmem, size = 0x4000, scoped, tag = 'output window, operand 0, single buffered']
    #allocation9 [shape = 'u8[16384]{0}', space=vmem, size = 0x4000, scoped, tag = 'output window, operand 1, single buffered']
    #allocation10 [shape = 's32[1]{0}', space=sflag, size = 0x4, scoped, tag = 'scoped memory for tpu_custom_call.1']
    %11 = vsyncpa [#allocation3], 0
    %12 = vsyncpa [#allocation6], 0
    %13 = vsyncpa [#allocation4], 0
    %14 = vsyncpa [#allocation10], 0
    // Predicated region
    $region2: #{tpu_custom_call.1} parent=1 // pred_check
      _
    $region3: #{tpu_custom_call.1} parent=1 // pred_check_branch
      %16 = sbr.rel (0) target = $region5
    $region4: #{tpu_custom_call.1} parent=1 // pred_region
      %s18 = ssub.s32 512, 512
      %19 = vsyncadd [#allocation3], %s18
      %s20 = sshll.u32 [#allocation2], 4
      %s21 = int_to_ptr.vmem [resolvable:$true] %s20
      %26 = dma.hbm_to_vmem [thread:$0]  %s0, 512, %s21, [#allocation3], 128, 128, 8
    $region5: #{tpu_custom_call.1} parent=1 // pred_fallthru
      _
    // Predicated region
    $region6: #{tpu_custom_call.1} parent=1 // pred_check
      _
    $region7: #{tpu_custom_call.1} parent=1 // pred_check_branch
      %28 = sbr.rel (0) target = $region9
    $region8: #{tpu_custom_call.1} parent=1 // pred_region
      %s30 = ssub.s32 512, 512
      %31 = vsyncadd [#allocation6], %s30
      %s32 = sshll.u32 [#allocation5], 4
      %s33 = int_to_ptr.vmem [resolvable:$true] %s32
      %38 = dma.hbm_to_vmem [thread:$0]  %s1, 512, %s33, [#allocation6], 128, 128, 8
    $region9: #{tpu_custom_call.1} parent=1 // pred_fallthru
      _
    // Predicated region
    $region10: #{tpu_custom_call.1} parent=1 // pred_check
      _
    $region11: #{tpu_custom_call.1} parent=1 // pred_check_branch
      %40 = sbr.rel (0) target = $region13
    $region12: #{tpu_custom_call.1} parent=1 // pred_region
      %s42 = ssub.s32 512, 512
      %43 = vsyncadd [#allocation6], %s42
      %s44 = sshll.u32 [#allocation7], 4
      %s45 = int_to_ptr.vmem [resolvable:$true] %s44
      %50 = dma.hbm_to_vmem [thread:$0]  %s2, 512, %s45, [#allocation6], 128, 128, 8
    $region13: #{tpu_custom_call.1} parent=1 // pred_fallthru
      _
    // Predicated region
    $region14: #{tpu_custom_call.1} parent=1 // pred_check
      _
    $region15: #{tpu_custom_call.1} parent=1 // pred_check_branch
      %52 = sbr.rel (0) target = $region17
    $region16: #{tpu_custom_call.1} parent=1 // pred_region
      _
    $region17: #{tpu_custom_call.1} parent=1 // pred_fallthru
      _
    // Predicated region
    $region18: #{tpu_custom_call.1} parent=1 // pred_check
      _
    $region19: #{tpu_custom_call.1} parent=1 // pred_check_branch
      %54 = sbr.rel (0) target = $region21
    $region20: #{tpu_custom_call.1} parent=1 // pred_region
      %55 = dma.done [#allocation3], 512
    $region21: #{tpu_custom_call.1} parent=1 // pred_fallthru
      _
    // Predicated region
    $region22: #{tpu_custom_call.1} parent=1 // pred_check
      _
    $region23: #{tpu_custom_call.1} parent=1 // pred_check_branch
      %57 = sbr.rel (0) target = $region25
    $region24: #{tpu_custom_call.1} parent=1 // pred_region
      %58 = dma.done [#allocation6], 512
    $region25: #{tpu_custom_call.1} parent=1 // pred_fallthru
      _
    // Predicated region
    $region26: #{tpu_custom_call.1} parent=1 // pred_check
      _
    $region27: #{tpu_custom_call.1} parent=1 // pred_check_branch
      %60 = sbr.rel (0) target = $region29
    $region28: #{tpu_custom_call.1} parent=1 // pred_region
      %61 = dma.done [#allocation6], 512
    $region29: #{tpu_custom_call.1} parent=1 // pred_fallthru
      _
    %v62 = vld [vmem:[#allocation2] sm:$0xff]
    %v63 = vld [vmem:[#allocation2 + $0x8] sm:$0xff]
    %v64 = vld [vmem:[#allocation2 + $0x10] sm:$0xff]
    %v65 = vld [vmem:[#allocation2 + $0x18] sm:$0xff]
    %v66 = vmul.f32 %v62, 0.25
    %v67 = vmul.f32 %v63, 0.25
    %v68 = vmul.f32 %v64, 0.25
    %v69 = vmul.f32 %v65, 0.25
    %v70 = vld [vmem:[#allocation5] sm:$0xff]
    %v71 = vld [vmem:[#allocation5 + $0x8] sm:$0xff]
    %v72 = vld [vmem:[#allocation5 + $0x10] sm:$0xff]
    %v73 = vld [vmem:[#allocation5 + $0x18] sm:$0xff]
    %vm74 = vcmask 130048
    %v76 = vsel %vm74, %v66, 0
    %v79 = vsel %vm74, %v70, 0
    %81 = vmatprep.subr.mxu0 0.0
    %82 = vmatpush1.xpose.msra.mxu0 %v79
    %83 = vmatprep.subr.mxu0 0.0
    %84 = vmatpush1.xpose.msra.mxu0 0.0
    %85 = vmatprep.subr.mxu0 0.0
    %86 = vmatpush1.xpose.msra.mxu0 0.0
    %87 = vmatprep.subr.mxu0 0.0
    %88 = vmatpush1.xpose.msra.mxu0 0.0
    %89 = vmatprep.subr.mxu0 0.0
    %90 = vmatpush1.xpose.msra.mxu0 0.0
    %91 = vmatprep.subr.mxu0 0.0
    %92 = vmatpush1.xpose.msra.mxu0 0.0
    %93 = vmatprep.subr.mxu0 0.0
    %94 = vmatpush1.xpose.msra.mxu0 0.0
    %95 = vmatprep.subr.mxu0 0.0
    %96 = vmatpush1.xpose.msra.mxu0 0.0
    %97 = vmatprep.subr.mxu0 0.0
    %98 = vmatpush1.xpose.msra.mxu0 0.0
    %99 = vmatprep.subr.mxu0 0.0
    %100 = vmatpush1.xpose.msra.mxu0 0.0
    %101 = vmatprep.subr.mxu0 0.0
    %102 = vmatpush1.xpose.msra.mxu0 0.0
    %103 = vmatprep.subr.mxu0 0.0
    %104 = vmatpush1.xpose.msra.mxu0 0.0
    %105 = vmatprep.subr.mxu0 0.0
    %106 = vmatpush1.xpose.msra.mxu0 0.0
    %107 = vmatprep.subr.mxu0 0.0
    %108 = vmatpush1.xpose.msra.mxu0 0.0
    %109 = vmatprep.subr.mxu0 0.0
    %110 = vmatpush1.xpose.msra.mxu0 0.0
    %111 = vmatprep.subr.mxu0 0.0
    %112 = vmatpush1.xpose.msra.mxu0 0.0
    %113 = vmatprep.subr.mxu0 0.0
    %114 = vmatpush1.xpose.msra.mxu0 0.0
    %115 = vmatprep.subr.mxu0 0.0
    %116 = vmatpush1.xpose.msra.mxu0 0.0
    %117 = vmatprep.subr.mxu0 0.0
    %118 = vmatpush1.xpose.msra.mxu0 0.0
    %119 = vmatprep.subr.mxu0 0.0
    %120 = vmatpush1.xpose.msra.mxu0 0.0
    %121 = vmatprep.subr.mxu0 0.0
    %122 = vmatpush1.xpose.msra.mxu0 0.0
    %123 = vmatprep.subr.mxu0 0.0
    %124 = vmatpush1.xpose.msra.mxu0 0.0
    %125 = vmatprep.subr.mxu0 0.0
    %126 = vmatpush1.xpose.msra.mxu0 0.0
    %127 = vmatprep.subr.mxu0 0.0
    %128 = vmatpush1.xpose.msra.mxu0 0.0
    %129 = vmatprep.subr.mxu0 0.0
    %130 = vmatpush1.xpose.msra.mxu0 0.0
    %131 = vmatprep.subr.mxu0 0.0
    %132 = vmatpush1.xpose.msra.mxu0 0.0
    %133 = vmatprep.subr.mxu0 0.0
    %134 = vmatpush1.xpose.msra.mxu0 0.0
    %135 = vmatprep.subr.mxu0 0.0
    %136 = vmatpush1.xpose.msra.mxu0 0.0
    %137 = vmatprep.subr.mxu0 0.0
    %138 = vmatpush1.xpose.msra.mxu0 0.0
    %139 = vmatprep.subr.mxu0 0.0
    %140 = vmatpush1.xpose.msra.mxu0 0.0
    %141 = vmatprep.subr.mxu0 0.0
    %142 = vmatpush1.xpose.msra.mxu0 0.0
    %143 = vmatprep.subr.mxu0 0.0
    %144 = vmatpush1.xpose.msra.mxu0 0.0
    %145 = vmatprep.mubr.f32.mxu0 0.0
    %146 = vmatmul.mubr.f32.gmra.mrb[0].mxu0 %v76
    %v147 = vpop.f32.mrb[0].mxu0
    %v148 = vadd.f32 0.0, %v147
    %v149 = vpop.f32.mrb[0].mxu0
    %150 = vdwg.mxu0
    %v152 = vsel %vm74, %v67, 0
    %v155 = vsel %vm74, %v71, 0
    %157 = vmatprep.subr.mxu0 0.0
    %158 = vmatpush1.xpose.msra.mxu0 %v155
    %159 = vmatprep.subr.mxu0 0.0
    %160 = vmatpush1.xpose.msra.mxu0 0.0
    %161 = vmatprep.subr.mxu0 0.0
    %162 = vmatpush1.xpose.msra.mxu0 0.0
    %163 = vmatprep.subr.mxu0 0.0
    %164 = vmatpush1.xpose.msra.mxu0 0.0
    %165 = vmatprep.subr.mxu0 0.0
    %166 = vmatpush1.xpose.msra.mxu0 0.0
    %167 = vmatprep.subr.mxu0 0.0
    %168 = vmatpush1.xpose.msra.mxu0 0.0
    %169 = vmatprep.subr.mxu0 0.0
    %170 = vmatpush1.xpose.msra.mxu0 0.0
    %171 = vmatprep.subr.mxu0 0.0
    %172 = vmatpush1.xpose.msra.mxu0 0.0
    %173 = vmatprep.subr.mxu0 0.0
    %174 = vmatpush1.xpose.msra.mxu0 0.0
    %175 = vmatprep.subr.mxu0 0.0
    %176 = vmatpush1.xpose.msra.mxu0 0.0
    %177 = vmatprep.subr.mxu0 0.0
    %178 = vmatpush1.xpose.msra.mxu0 0.0
    %179 = vmatprep.subr.mxu0 0.0
    %180 = vmatpush1.xpose.msra.mxu0 0.0
    %181 = vmatprep.subr.mxu0 0.0
    %182 = vmatpush1.xpose.msra.mxu0 0.0
    %183 = vmatprep.subr.mxu0 0.0
    %184 = vmatpush1.xpose.msra.mxu0 0.0
    %185 = vmatprep.subr.mxu0 0.0
    %186 = vmatpush1.xpose.msra.mxu0 0.0
    %187 = vmatprep.subr.mxu0 0.0
    %188 = vmatpush1.xpose.msra.mxu0 0.0
    %189 = vmatprep.subr.mxu0 0.0
    %190 = vmatpush1.xpose.msra.mxu0 0.0
    %191 = vmatprep.subr.mxu0 0.0
    %192 = vmatpush1.xpose.msra.mxu0 0.0
    %193 = vmatprep.subr.mxu0 0.0
    %194 = vmatpush1.xpose.msra.mxu0 0.0
    %195 = vmatprep.subr.mxu0 0.0
    %196 = vmatpush1.xpose.msra.mxu0 0.0
    %197 = vmatprep.subr.mxu0 0.0
    %198 = vmatpush1.xpose.msra.mxu0 0.0
    %199 = vmatprep.subr.mxu0 0.0
    %200 = vmatpush1.xpose.msra.mxu0 0.0
    %201 = vmatprep.subr.mxu0 0.0
    %202 = vmatpush1.xpose.msra.mxu0 0.0
    %203 = vmatprep.subr.mxu0 0.0
    %204 = vmatpush1.xpose.msra.mxu0 0.0
    %205 = vmatprep.subr.mxu0 0.0
    %206 = vmatpush1.xpose.msra.mxu0 0.0
    %207 = vmatprep.subr.mxu0 0.0
    %208 = vmatpush1.xpose.msra.mxu0 0.0
    %209 = vmatprep.subr.mxu0 0.0
    %210 = vmatpush1.xpose.msra.mxu0 0.0
    %211 = vmatprep.subr.mxu0 0.0
    %212 = vmatpush1.xpose.msra.mxu0 0.0
    %213 = vmatprep.subr.mxu0 0.0
    %214 = vmatpush1.xpose.msra.mxu0 0.0
    %215 = vmatprep.subr.mxu0 0.0
    %216 = vmatpush1.xpose.msra.mxu0 0.0
    %217 = vmatprep.subr.mxu0 0.0
    %218 = vmatpush1.xpose.msra.mxu0 0.0
    %219 = vmatprep.subr.mxu0 0.0
    %220 = vmatpush1.xpose.msra.mxu0 0.0
    %221 = vmatprep.mubr.f32.mxu0 0.0
    %222 = vmatmul.mubr.f32.gmra.mrb[0].mxu0 %v152
    %v223 = vpop.f32.mrb[0].mxu0
    %v224 = vadd.f32 0.0, %v223
    %v225 = vpop.f32.mrb[0].mxu0
    %226 = vdwg.mxu0
    %v228 = vsel %vm74, %v68, 0
    %v231 = vsel %vm74, %v72, 0
    %233 = vmatprep.subr.mxu0 0.0
    %234 = vmatpush1.xpose.msra.mxu0 %v231
    %235 = vmatprep.subr.mxu0 0.0
    %236 = vmatpush1.xpose.msra.mxu0 0.0
    %237 = vmatprep.subr.mxu0 0.0
    %238 = vmatpush1.xpose.msra.mxu0 0.0
    %239 = vmatprep.subr.mxu0 0.0
    %240 = vmatpush1.xpose.msra.mxu0 0.0
    %241 = vmatprep.subr.mxu0 0.0
    %242 = vmatpush1.xpose.msra.mxu0 0.0
    %243 = vmatprep.subr.mxu0 0.0
    %244 = vmatpush1.xpose.msra.mxu0 0.0
    %245 = vmatprep.subr.mxu0 0.0
    %246 = vmatpush1.xpose.msra.mxu0 0.0
    %247 = vmatprep.subr.mxu0 0.0
    %248 = vmatpush1.xpose.msra.mxu0 0.0
    %249 = vmatprep.subr.mxu0 0.0
    %250 = vmatpush1.xpose.msra.mxu0 0.0
    %251 = vmatprep.subr.mxu0 0.0
    %252 = vmatpush1.xpose.msra.mxu0 0.0
    %253 = vmatprep.subr.mxu0 0.0
    %254 = vmatpush1.xpose.msra.mxu0 0.0
    %255 = vmatprep.subr.mxu0 0.0
    %256 = vmatpush1.xpose.msra.mxu0 0.0
    %257 = vmatprep.subr.mxu0 0.0
    %258 = vmatpush1.xpose.msra.mxu0 0.0
    %259 = vmatprep.subr.mxu0 0.0
    %260 = vmatpush1.xpose.msra.mxu0 0.0
    %261 = vmatprep.subr.mxu0 0.0
    %262 = vmatpush1.xpose.msra.mxu0 0.0
    %263 = vmatprep.subr.mxu0 0.0
    %264 = vmatpush1.xpose.msra.mxu0 0.0
    %265 = vmatprep.subr.mxu0 0.0
    %266 = vmatpush1.xpose.msra.mxu0 0.0
    %267 = vmatprep.subr.mxu0 0.0
    %268 = vmatpush1.xpose.msra.mxu0 0.0
    %269 = vmatprep.subr.mxu0 0.0
    %270 = vmatpush1.xpose.msra.mxu0 0.0
    %271 = vmatprep.subr.mxu0 0.0
    %272 = vmatpush1.xpose.msra.mxu0 0.0
    %273 = vmatprep.subr.mxu0 0.0
    %274 = vmatpush1.xpose.msra.mxu0 0.0
    %275 = vmatprep.subr.mxu0 0.0
    %276 = vmatpush1.xpose.msra.mxu0 0.0
    %277 = vmatprep.subr.mxu0 0.0
    %278 = vmatpush1.xpose.msra.mxu0 0.0
    %279 = vmatprep.subr.mxu0 0.0
    %280 = vmatpush1.xpose.msra.mxu0 0.0
    %281 = vmatprep.subr.mxu0 0.0
    %282 = vmatpush1.xpose.msra.mxu0 0.0
    %283 = vmatprep.subr.mxu0 0.0
    %284 = vmatpush1.xpose.msra.mxu0 0.0
    %285 = vmatprep.subr.mxu0 0.0
    %286 = vmatpush1.xpose.msra.mxu0 0.0
    %287 = vmatprep.subr.mxu0 0.0
    %288 = vmatpush1.xpose.msra.mxu0 0.0
    %289 = vmatprep.subr.mxu0 0.0
    %290 = vmatpush1.xpose.msra.mxu0 0.0
    %291 = vmatprep.subr.mxu0 0.0
    %292 = vmatpush1.xpose.msra.mxu0 0.0
    %293 = vmatprep.subr.mxu0 0.0
    %294 = vmatpush1.xpose.msra.mxu0 0.0
    %295 = vmatprep.subr.mxu0 0.0
    %296 = vmatpush1.xpose.msra.mxu0 0.0
    %297 = vmatprep.mubr.f32.mxu0 0.0
    %298 = vmatmul.mubr.f32.gmra.mrb[0].mxu0 %v228
    %v299 = vpop.f32.mrb[0].mxu0
    %v300 = vadd.f32 0.0, %v299
    %v301 = vpop.f32.mrb[0].mxu0
    %302 = vdwg.mxu0
    %v304 = vsel %vm74, %v69, 0
    %v307 = vsel %vm74, %v73, 0
    %309 = vmatprep.subr.mxu0 0.0
    %310 = vmatpush1.xpose.msra.mxu0 %v307
    %311 = vmatprep.subr.mxu0 0.0
    %312 = vmatpush1.xpose.msra.mxu0 0.0
    %313 = vmatprep.subr.mxu0 0.0
    %314 = vmatpush1.xpose.msra.mxu0 0.0
    %315 = vmatprep.subr.mxu0 0.0
    %316 = vmatpush1.xpose.msra.mxu0 0.0
    %317 = vmatprep.subr.mxu0 0.0
    %318 = vmatpush1.xpose.msra.mxu0 0.0
    %319 = vmatprep.subr.mxu0 0.0
    %320 = vmatpush1.xpose.msra.mxu0 0.0
    %321 = vmatprep.subr.mxu0 0.0
    %322 = vmatpush1.xpose.msra.mxu0 0.0
    %323 = vmatprep.subr.mxu0 0.0
    %324 = vmatpush1.xpose.msra.mxu0 0.0
    %325 = vmatprep.subr.mxu0 0.0
    %326 = vmatpush1.xpose.msra.mxu0 0.0
    %327 = vmatprep.subr.mxu0 0.0
    %328 = vmatpush1.xpose.msra.mxu0 0.0
    %329 = vmatprep.subr.mxu0 0.0
    %330 = vmatpush1.xpose.msra.mxu0 0.0
    %331 = vmatprep.subr.mxu0 0.0
    %332 = vmatpush1.xpose.msra.mxu0 0.0
    %333 = vmatprep.subr.mxu0 0.0
    %334 = vmatpush1.xpose.msra.mxu0 0.0
    %335 = vmatprep.subr.mxu0 0.0
    %336 = vmatpush1.xpose.msra.mxu0 0.0
    %337 = vmatprep.subr.mxu0 0.0
    %338 = vmatpush1.xpose.msra.mxu0 0.0
    %339 = vmatprep.subr.mxu0 0.0
    %340 = vmatpush1.xpose.msra.mxu0 0.0
    %341 = vmatprep.subr.mxu0 0.0
    %342 = vmatpush1.xpose.msra.mxu0 0.0
    %343 = vmatprep.subr.mxu0 0.0
    %344 = vmatpush1.xpose.msra.mxu0 0.0
    %345 = vmatprep.subr.mxu0 0.0
    %346 = vmatpush1.xpose.msra.mxu0 0.0
    %347 = vmatprep.subr.mxu0 0.0
    %348 = vmatpush1.xpose.msra.mxu0 0.0
    %349 = vmatprep.subr.mxu0 0.0
    %350 = vmatpush1.xpose.msra.mxu0 0.0
    %351 = vmatprep.subr.mxu0 0.0
    %352 = vmatpush1.xpose.msra.mxu0 0.0
    %353 = vmatprep.subr.mxu0 0.0
    %354 = vmatpush1.xpose.msra.mxu0 0.0
    %355 = vmatprep.subr.mxu0 0.0
    %356 = vmatpush1.xpose.msra.mxu0 0.0
    %357 = vmatprep.subr.mxu0 0.0
    %358 = vmatpush1.xpose.msra.mxu0 0.0
    %359 = vmatprep.subr.mxu0 0.0
    %360 = vmatpush1.xpose.msra.mxu0 0.0
    %361 = vmatprep.subr.mxu0 0.0
    %362 = vmatpush1.xpose.msra.mxu0 0.0
    %363 = vmatprep.subr.mxu0 0.0
    %364 = vmatpush1.xpose.msra.mxu0 0.0
    %365 = vmatprep.subr.mxu0 0.0
    %366 = vmatpush1.xpose.msra.mxu0 0.0
    %367 = vmatprep.subr.mxu0 0.0
    %368 = vmatpush1.xpose.msra.mxu0 0.0
    %369 = vmatprep.subr.mxu0 0.0
    %370 = vmatpush1.xpose.msra.mxu0 0.0
    %371 = vmatprep.subr.mxu0 0.0
    %372 = vmatpush1.xpose.msra.mxu0 0.0
    %373 = vmatprep.mubr.f32.mxu0 0.0
    %374 = vmatmul.mubr.f32.gmra.mrb[0].mxu0 %v304
    %v375 = vpop.f32.mrb[0].mxu0
    %v376 = vadd.f32 0.0, %v375
    %v377 = vpop.f32.mrb[0].mxu0
    %378 = vdwg.mxu0
    %v379 = vld [vmem:[%s3] sm:$0xff]
    %vm380 = vcmp.eq.f32.partialorder %v379, 1.0
    %v381 = vsel %vm380, 1, 0
    %vm382 = vcmp.eq.s32.totalorder %v381, 1
    %v383 = vsel %vm382, -1e+09, %v148
    %v384 = vsel %vm382, -1e+09, %v224
    %v385 = vsel %vm382, -1e+09, %v300
    %v386 = vsel %vm382, -1e+09, %v376
    %vm387 = vcmask 64512
    %v388 = vsel %vm387, %v383, -inf
    %389 = vmax.xlane.f32.xlu0 %v388
    %v390 = vpop.xlane.xlu0 %389
    %v391 = vsel %vm387, %v384, -inf
    %392 = vmax.xlane.f32.xlu0 %v391
    %v393 = vpop.xlane.xlu0 %392
    %v394 = vsel %vm387, %v385, -inf
    %395 = vmax.xlane.f32.xlu0 %v394
    %v396 = vpop.xlane.xlu0 %395
    %v397 = vsel %vm387, %v386, -inf
    %398 = vmax.xlane.f32.xlu0 %v397
    %v399 = vpop.xlane.xlu0 %398
    %v400 = vsub.f32 %v383, %v390
    %v401 = vsub.f32 %v384, %v393
    %v402 = vsub.f32 %v385, %v396
    %v403 = vsub.f32 %v386, %v399
    %v404 = vmul.f32 %v400, 1.442695
    %v405 = vpow.pop %v404
    %v406 = vmul.f32 %v401, 1.442695
    %v407 = vpow.pop %v406
    %v408 = vmul.f32 %v402, 1.442695
    %v409 = vpow.pop %v408
    %v410 = vmul.f32 %v403, 1.442695
    %v411 = vpow.pop %v410
    %v412 = vsel %vm387, %v405, 0.0
    %413 = vadd.xlane.f32.xlu0 %v412
    %v414 = vpop.xlane.xlu0 %413
    %v415 = vsel %vm387, %v407, 0.0
    %416 = vadd.xlane.f32.xlu0 %v415
    %v417 = vpop.xlane.xlu0 %416
    %v418 = vsel %vm387, %v409, 0.0
    %419 = vadd.xlane.f32.xlu0 %v418
    %v420 = vpop.xlane.xlu0 %419
    %v421 = vsel %vm387, %v411, 0.0
    %422 = vadd.xlane.f32.xlu0 %v421
    %v423 = vpop.xlane.xlu0 %422
    %v424 = vrcp.pop %v414
    %v425 = vrcp.pop %v417
    %v426 = vrcp.pop %v420
    %v427 = vrcp.pop %v423
    %v428 = vmul.f32 %v405, %v424
    %v429 = vmul.f32 %v407, %v425
    %v430 = vmul.f32 %v409, %v426
    %v431 = vmul.f32 %v411, %v427
    %432 = vst.msk [vmem:[#allocation9] sm:$0xff] %vm387, %v428
    %433 = vst.msk [vmem:[#allocation9 + $0x8] sm:$0xff] %vm387, %v429
    %434 = vst.msk [vmem:[#allocation9 + $0x10] sm:$0xff] %vm387, %v430
    %435 = vst.msk [vmem:[#allocation9 + $0x18] sm:$0xff] %vm387, %v431
    %v436 = vld [vmem:[#allocation7] sm:$0xff]
    %v437 = vld [vmem:[#allocation7 + $0x8] sm:$0xff]
    %v438 = vld [vmem:[#allocation7 + $0x10] sm:$0xff]
    %v439 = vld [vmem:[#allocation7 + $0x18] sm:$0xff]
    %v441 = vsel %vm387, %v428, 0
    %443 = vmatprep.subr.mxu0 0.0
    %444 = vmatpush1.msra.mxu0 %v436
    %445 = vmatprep.subr.mxu0 0.0
    %446 = vmatpush1.msra.mxu0 0.0
    %447 = vmatprep.subr.mxu0 0.0
    %448 = vmatpush1.msra.mxu0 0.0
    %449 = vmatprep.subr.mxu0 0.0
    %450 = vmatpush1.msra.mxu0 0.0
    %451 = vmatprep.subr.mxu0 0.0
    %452 = vmatpush1.msra.mxu0 0.0
    %453 = vmatprep.subr.mxu0 0.0
    %454 = vmatpush1.msra.mxu0 0.0
    %455 = vmatprep.subr.mxu0 0.0
    %456 = vmatpush1.msra.mxu0 0.0
    %457 = vmatprep.subr.mxu0 0.0
    %458 = vmatpush1.msra.mxu0 0.0
    %459 = vmatprep.subr.mxu0 0.0
    %460 = vmatpush1.msra.mxu0 0.0
    %461 = vmatprep.subr.mxu0 0.0
    %462 = vmatpush1.msra.mxu0 0.0
    %463 = vmatprep.subr.mxu0 0.0
    %464 = vmatpush1.msra.mxu0 0.0
    %465 = vmatprep.subr.mxu0 0.0
    %466 = vmatpush1.msra.mxu0 0.0
    %467 = vmatprep.subr.mxu0 0.0
    %468 = vmatpush1.msra.mxu0 0.0
    %469 = vmatprep.subr.mxu0 0.0
    %470 = vmatpush1.msra.mxu0 0.0
    %471 = vmatprep.subr.mxu0 0.0
    %472 = vmatpush1.msra.mxu0 0.0
    %473 = vmatprep.subr.mxu0 0.0
    %474 = vmatpush1.msra.mxu0 0.0
    %475 = vmatprep.subr.mxu0 0.0
    %476 = vmatpush1.msra.mxu0 0.0
    %477 = vmatprep.subr.mxu0 0.0
    %478 = vmatpush1.msra.mxu0 0.0
    %479 = vmatprep.subr.mxu0 0.0
    %480 = vmatpush1.msra.mxu0 0.0
    %481 = vmatprep.subr.mxu0 0.0
    %482 = vmatpush1.msra.mxu0 0.0
    %483 = vmatprep.subr.mxu0 0.0
    %484 = vmatpush1.msra.mxu0 0.0
    %485 = vmatprep.subr.mxu0 0.0
    %486 = vmatpush1.msra.mxu0 0.0
    %487 = vmatprep.subr.mxu0 0.0
    %488 = vmatpush1.msra.mxu0 0.0
    %489 = vmatprep.subr.mxu0 0.0
    %490 = vmatpush1.msra.mxu0 0.0
    %491 = vmatprep.subr.mxu0 0.0
    %492 = vmatpush1.msra.mxu0 0.0
    %493 = vmatprep.subr.mxu0 0.0
    %494 = vmatpush1.msra.mxu0 0.0
    %495 = vmatprep.subr.mxu0 0.0
    %496 = vmatpush1.msra.mxu0 0.0
    %497 = vmatprep.subr.mxu0 0.0
    %498 = vmatpush1.msra.mxu0 0.0
    %499 = vmatprep.subr.mxu0 0.0
    %500 = vmatpush1.msra.mxu0 0.0
    %501 = vmatprep.subr.mxu0 0.0
    %502 = vmatpush1.msra.mxu0 0.0
    %503 = vmatprep.subr.mxu0 0.0
    %504 = vmatpush1.msra.mxu0 0.0
    %505 = vmatprep.subr.mxu0 0.0
    %506 = vmatpush1.msra.mxu0 0.0
    %507 = vmatprep.mubr.f32.mxu0 0.0
    %508 = vmatmul.mubr.f32.gmra.mrb[0].mxu0 %v441
    %v509 = vpop.f32.mrb[0].mxu0
    %v510 = vadd.f32 0.0, %v509
    %v511 = vpop.f32.mrb[0].mxu0
    %512 = vdwg.mxu0
    %v514 = vsel %vm387, %v429, 0
    %516 = vmatprep.subr.mxu0 0.0
    %517 = vmatpush1.msra.mxu0 %v437
    %518 = vmatprep.subr.mxu0 0.0
    %519 = vmatpush1.msra.mxu0 0.0
    %520 = vmatprep.subr.mxu0 0.0
    %521 = vmatpush1.msra.mxu0 0.0
    %522 = vmatprep.subr.mxu0 0.0
    %523 = vmatpush1.msra.mxu0 0.0
    %524 = vmatprep.subr.mxu0 0.0
    %525 = vmatpush1.msra.mxu0 0.0
    %526 = vmatprep.subr.mxu0 0.0
    %527 = vmatpush1.msra.mxu0 0.0
    %528 = vmatprep.subr.mxu0 0.0
    %529 = vmatpush1.msra.mxu0 0.0
    %530 = vmatprep.subr.mxu0 0.0
    %531 = vmatpush1.msra.mxu0 0.0
    %532 = vmatprep.subr.mxu0 0.0
    %533 = vmatpush1.msra.mxu0 0.0
    %534 = vmatprep.subr.mxu0 0.0
    %535 = vmatpush1.msra.mxu0 0.0
    %536 = vmatprep.subr.mxu0 0.0
    %537 = vmatpush1.msra.mxu0 0.0
    %538 = vmatprep.subr.mxu0 0.0
    %539 = vmatpush1.msra.mxu0 0.0
    %540 = vmatprep.subr.mxu0 0.0
    %541 = vmatpush1.msra.mxu0 0.0
    %542 = vmatprep.subr.mxu0 0.0
    %543 = vmatpush1.msra.mxu0 0.0
    %544 = vmatprep.subr.mxu0 0.0
    %545 = vmatpush1.msra.mxu0 0.0
    %546 = vmatprep.subr.mxu0 0.0
    %547 = vmatpush1.msra.mxu0 0.0
    %548 = vmatprep.subr.mxu0 0.0
    %549 = vmatpush1.msra.mxu0 0.0
    %550 = vmatprep.subr.mxu0 0.0
    %551 = vmatpush1.msra.mxu0 0.0
    %552 = vmatprep.subr.mxu0 0.0
    %553 = vmatpush1.msra.mxu0 0.0
    %554 = vmatprep.subr.mxu0 0.0
    %555 = vmatpush1.msra.mxu0 0.0
    %556 = vmatprep.subr.mxu0 0.0
    %557 = vmatpush1.msra.mxu0 0.0
    %558 = vmatprep.subr.mxu0 0.0
    %559 = vmatpush1.msra.mxu0 0.0
    %560 = vmatprep.subr.mxu0 0.0
    %561 = vmatpush1.msra.mxu0 0.0
    %562 = vmatprep.subr.mxu0 0.0
    %563 = vmatpush1.msra.mxu0 0.0
    %564 = vmatprep.subr.mxu0 0.0
    %565 = vmatpush1.msra.mxu0 0.0
    %566 = vmatprep.subr.mxu0 0.0
    %567 = vmatpush1.msra.mxu0 0.0
    %568 = vmatprep.subr.mxu0 0.0
    %569 = vmatpush1.msra.mxu0 0.0
    %570 = vmatprep.subr.mxu0 0.0
    %571 = vmatpush1.msra.mxu0 0.0
    %572 = vmatprep.subr.mxu0 0.0
    %573 = vmatpush1.msra.mxu0 0.0
    %574 = vmatprep.subr.mxu0 0.0
    %575 = vmatpush1.msra.mxu0 0.0
    %576 = vmatprep.subr.mxu0 0.0
    %577 = vmatpush1.msra.mxu0 0.0
    %578 = vmatprep.subr.mxu0 0.0
    %579 = vmatpush1.msra.mxu0 0.0
    %580 = vmatprep.mubr.f32.mxu0 0.0
    %581 = vmatmul.mubr.f32.gmra.mrb[0].mxu0 %v514
    %v582 = vpop.f32.mrb[0].mxu0
    %v583 = vadd.f32 0.0, %v582
    %v584 = vpop.f32.mrb[0].mxu0
    %585 = vdwg.mxu0
    %v587 = vsel %vm387, %v430, 0
    %589 = vmatprep.subr.mxu0 0.0
    %590 = vmatpush1.msra.mxu0 %v438
    %591 = vmatprep.subr.mxu0 0.0
    %592 = vmatpush1.msra.mxu0 0.0
    %593 = vmatprep.subr.mxu0 0.0
    %594 = vmatpush1.msra.mxu0 0.0
    %595 = vmatprep.subr.mxu0 0.0
    %596 = vmatpush1.msra.mxu0 0.0
    %597 = vmatprep.subr.mxu0 0.0
    %598 = vmatpush1.msra.mxu0 0.0
    %599 = vmatprep.subr.mxu0 0.0
    %600 = vmatpush1.msra.mxu0 0.0
    %601 = vmatprep.subr.mxu0 0.0
    %602 = vmatpush1.msra.mxu0 0.0
    %603 = vmatprep.subr.mxu0 0.0
    %604 = vmatpush1.msra.mxu0 0.0
    %605 = vmatprep.subr.mxu0 0.0
    %606 = vmatpush1.msra.mxu0 0.0
    %607 = vmatprep.subr.mxu0 0.0
    %608 = vmatpush1.msra.mxu0 0.0
    %609 = vmatprep.subr.mxu0 0.0
    %610 = vmatpush1.msra.mxu0 0.0
    %611 = vmatprep.subr.mxu0 0.0
    %612 = vmatpush1.msra.mxu0 0.0
    %613 = vmatprep.subr.mxu0 0.0
    %614 = vmatpush1.msra.mxu0 0.0
    %615 = vmatprep.subr.mxu0 0.0
    %616 = vmatpush1.msra.mxu0 0.0
    %617 = vmatprep.subr.mxu0 0.0
    %618 = vmatpush1.msra.mxu0 0.0
    %619 = vmatprep.subr.mxu0 0.0
    %620 = vmatpush1.msra.mxu0 0.0
    %621 = vmatprep.subr.mxu0 0.0
    %622 = vmatpush1.msra.mxu0 0.0
    %623 = vmatprep.subr.mxu0 0.0
    %624 = vmatpush1.msra.mxu0 0.0
    %625 = vmatprep.subr.mxu0 0.0
    %626 = vmatpush1.msra.mxu0 0.0
    %627 = vmatprep.subr.mxu0 0.0
    %628 = vmatpush1.msra.mxu0 0.0
    %629 = vmatprep.subr.mxu0 0.0
    %630 = vmatpush1.msra.mxu0 0.0
    %631 = vmatprep.subr.mxu0 0.0
    %632 = vmatpush1.msra.mxu0 0.0
    %633 = vmatprep.subr.mxu0 0.0
    %634 = vmatpush1.msra.mxu0 0.0
    %635 = vmatprep.subr.mxu0 0.0
    %636 = vmatpush1.msra.mxu0 0.0
    %637 = vmatprep.subr.mxu0 0.0
    %638 = vmatpush1.msra.mxu0 0.0
    %639 = vmatprep.subr.mxu0 0.0
    %640 = vmatpush1.msra.mxu0 0.0
    %641 = vmatprep.subr.mxu0 0.0
    %642 = vmatpush1.msra.mxu0 0.0
    %643 = vmatprep.subr.mxu0 0.0
    %644 = vmatpush1.msra.mxu0 0.0
    %645 = vmatprep.subr.mxu0 0.0
    %646 = vmatpush1.msra.mxu0 0.0
    %647 = vmatprep.subr.mxu0 0.0
    %648 = vmatpush1.msra.mxu0 0.0
    %649 = vmatprep.subr.mxu0 0.0
    %650 = vmatpush1.msra.mxu0 0.0
    %651 = vmatprep.subr.mxu0 0.0
    %652 = vmatpush1.msra.mxu0 0.0
    %653 = vmatprep.mubr.f32.mxu0 0.0
    %654 = vmatmul.mubr.f32.gmra.mrb[0].mxu0 %v587
    %v655 = vpop.f32.mrb[0].mxu0
    %v656 = vadd.f32 0.0, %v655
    %v657 = vpop.f32.mrb[0].mxu0
    %658 = vdwg.mxu0
    %v660 = vsel %vm387, %v431, 0
    %662 = vmatprep.subr.mxu0 0.0
    %663 = vmatpush1.msra.mxu0 %v439
    %664 = vmatprep.subr.mxu0 0.0
    %665 = vmatpush1.msra.mxu0 0.0
    %666 = vmatprep.subr.mxu0 0.0
    %667 = vmatpush1.msra.mxu0 0.0
    %668 = vmatprep.subr.mxu0 0.0
    %669 = vmatpush1.msra.mxu0 0.0
    %670 = vmatprep.subr.mxu0 0.0
    %671 = vmatpush1.msra.mxu0 0.0
    %672 = vmatprep.subr.mxu0 0.0
    %673 = vmatpush1.msra.mxu0 0.0
    %674 = vmatprep.subr.mxu0 0.0
    %675 = vmatpush1.msra.mxu0 0.0
    %676 = vmatprep.subr.mxu0 0.0
    %677 = vmatpush1.msra.mxu0 0.0
    %678 = vmatprep.subr.mxu0 0.0
    %679 = vmatpush1.msra.mxu0 0.0
    %680 = vmatprep.subr.mxu0 0.0
    %681 = vmatpush1.msra.mxu0 0.0
    %682 = vmatprep.subr.mxu0 0.0
    %683 = vmatpush1.msra.mxu0 0.0
    %684 = vmatprep.subr.mxu0 0.0
    %685 = vmatpush1.msra.mxu0 0.0
    %686 = vmatprep.subr.mxu0 0.0
    %687 = vmatpush1.msra.mxu0 0.0
    %688 = vmatprep.subr.mxu0 0.0
    %689 = vmatpush1.msra.mxu0 0.0
    %690 = vmatprep.subr.mxu0 0.0
    %691 = vmatpush1.msra.mxu0 0.0
    %692 = vmatprep.subr.mxu0 0.0
    %693 = vmatpush1.msra.mxu0 0.0
    %694 = vmatprep.subr.mxu0 0.0
    %695 = vmatpush1.msra.mxu0 0.0
    %696 = vmatprep.subr.mxu0 0.0
    %697 = vmatpush1.msra.mxu0 0.0
    %698 = vmatprep.subr.mxu0 0.0
    %699 = vmatpush1.msra.mxu0 0.0
    %700 = vmatprep.subr.mxu0 0.0
    %701 = vmatpush1.msra.mxu0 0.0
    %702 = vmatprep.subr.mxu0 0.0
    %703 = vmatpush1.msra.mxu0 0.0
    %704 = vmatprep.subr.mxu0 0.0
    %705 = vmatpush1.msra.mxu0 0.0
    %706 = vmatprep.subr.mxu0 0.0
    %707 = vmatpush1.msra.mxu0 0.0
    %708 = vmatprep.subr.mxu0 0.0
    %709 = vmatpush1.msra.mxu0 0.0
    %710 = vmatprep.subr.mxu0 0.0
    %711 = vmatpush1.msra.mxu0 0.0
    %712 = vmatprep.subr.mxu0 0.0
    %713 = vmatpush1.msra.mxu0 0.0
    %714 = vmatprep.subr.mxu0 0.0
    %715 = vmatpush1.msra.mxu0 0.0
    %716 = vmatprep.subr.mxu0 0.0
    %717 = vmatpush1.msra.mxu0 0.0
    %718 = vmatprep.subr.mxu0 0.0
    %719 = vmatpush1.msra.mxu0 0.0
    %720 = vmatprep.subr.mxu0 0.0
    %721 = vmatpush1.msra.mxu0 0.0
    %722 = vmatprep.subr.mxu0 0.0
    %723 = vmatpush1.msra.mxu0 0.0
    %724 = vmatprep.subr.mxu0 0.0
    %725 = vmatpush1.msra.mxu0 0.0
    %726 = vmatprep.mubr.f32.mxu0 0.0
    %727 = vmatmul.mubr.f32.gmra.mrb[0].mxu0 %v660
    %v728 = vpop.f32.mrb[0].mxu0
    %v729 = vadd.f32 0.0, %v728
    %v730 = vpop.f32.mrb[0].mxu0
    %731 = vdwg.mxu0
    %732 = vst.msk [vmem:[#allocation8] sm:$0xff] %vm74, %v510
    %733 = vst.msk [vmem:[#allocation8 + $0x8] sm:$0xff] %vm74, %v583
    %734 = vst.msk [vmem:[#allocation8 + $0x10] sm:$0xff] %vm74, %v656
    %735 = vst.msk [vmem:[#allocation8 + $0x18] sm:$0xff] %vm74, %v729
    // Predicated region
    $region30: #{tpu_custom_call.1} parent=1 // pred_check
      _
    $region31: #{tpu_custom_call.1} parent=1 // pred_check_branch
      %737 = sbr.rel (0) target = $region33
    $region32: #{tpu_custom_call.1} parent=1 // pred_region
      %s739 = ssub.s32 512, 512
      %740 = vsyncadd [#allocation4], %s739
      %s741 = sshll.u32 [#allocation8], 4
      %s742 = int_to_ptr.vmem [resolvable:$true] %s741
      %747 = dma.vmem_to_hbm [thread:$0]  %s742, 512, %s4, [#allocation4], 128, 128, 8
    $region33: #{tpu_custom_call.1} parent=1 // pred_fallthru
      _
    // Predicated region
    $region34: #{tpu_custom_call.1} parent=1 // pred_check
      _
    $region35: #{tpu_custom_call.1} parent=1 // pred_check_branch
      %749 = sbr.rel (0) target = $region37
    $region36: #{tpu_custom_call.1} parent=1 // pred_region
      %s751 = ssub.s32 512, 512
      %752 = vsyncadd [#allocation10], %s751
      %s753 = sshll.u32 [#allocation9], 4
      %s754 = int_to_ptr.vmem [resolvable:$true] %s753
      %759 = dma.vmem_to_hbm [thread:$0]  %s754, 512, %s5, [#allocation10], 128, 128, 8
    $region37: #{tpu_custom_call.1} parent=1 // pred_fallthru
      _
    // Predicated region
    $region38: #{tpu_custom_call.1} parent=1 // pred_check
      _
    $region39: #{tpu_custom_call.1} parent=1 // pred_check_branch
      %761 = sbr.rel (0) target = $region41
    $region40: #{tpu_custom_call.1} parent=1 // pred_region
      %762 = dma.done [#allocation4], 512
    $region41: #{tpu_custom_call.1} parent=1 // pred_fallthru
      _
    // Predicated region
    $region42: #{tpu_custom_call.1} parent=1 // pred_check
      _
    $region43: #{tpu_custom_call.1} parent=1 // pred_check_branch
      %764 = sbr.rel (0) target = $region45
    $region44: #{tpu_custom_call.1} parent=1 // pred_region
      %765 = dma.done [#allocation10], 512
    $region45: #{tpu_custom_call.1} parent=1 // pred_fallthru
      _
    %766 = vsyncpa [#allocation3], 1
    %767 = vsyncpa [#allocation6], 1
    %768 = vsyncpa [#allocation4], 1
    %769 = vsyncpa [#allocation10], 1

</llo_original>
